<compile_context>
chip_gen: v6e
topology: v6e:2x2x1
jax: 0.10.0
libtpu: 0.0.40
codegen_flags: <defaults>
</compile_context>

<pallas_src>
import jax
import jax.numpy as jnp
import numpy as np
from jax import lax
from jax.experimental import pallas as pl
from jax.experimental.pallas import tpu as pltpu

TM_MAX = 256   # rows per output block      (multiple of 8)
TN_MAX = 512   # output features per block  (multiple of 128 -> unmasked vst)
TK_MAX = 512   # reduction chunk            (multiple of 128)


def _round_up(x, m):
    return (x + m - 1) // m * m


def _plan_k(K):
    """Returns (padded_K, TK). Pads K only when it is not 128-divisible."""
    if K <= TK_MAX:
        return K, K                      # single reduction step, no padding
    for tk in (512, 256, 128):
        if K % tk == 0:
            return K, tk                 # exact tiling, no padding
    Kp = _round_up(K, 128)               # rare fallback: pad K once per call
    for tk in (512, 256, 128):
        if Kp % tk == 0:
            return Kp, tk
    return Kp, 128


def _linear_relu_kernel_f32out(x_ref, w_ref, b_ref, o_ref):
    """ReLU(x @ W.T + b); accumulates directly in the f32 output tile."""
    k = pl.program_id(2)

    @pl.when(k == 0)
    def _init():
        o_ref[...] = jnp.zeros_like(o_ref)

    # x: (TM, TK), w: (TN, TK)  -> contract last dims (no wrapper transpose).
    o_ref[...] += lax.dot_general(
        x_ref[...], w_ref[...],
        dimension_numbers=(((1,), (1,)), ((), ())),
        preferred_element_type=jnp.float32)

    @pl.when(k == pl.num_programs(2) - 1)
    def _finalize():
        o_ref[...] = jnp.maximum(o_ref[...] + b_ref[...], 0.0)


def _linear_relu_kernel_acc(x_ref, w_ref, b_ref, o_ref, acc_ref):
    """Same, but keeps an f32 VMEM accumulator for narrow output dtypes."""
    k = pl.program_id(2)

    @pl.when(k == 0)
    def _init():
        acc_ref[...] = jnp.zeros_like(acc_ref)

    acc_ref[...] += lax.dot_general(
        x_ref[...], w_ref[...],
        dimension_numbers=(((1,), (1,)), ((), ())),
        preferred_element_type=jnp.float32)

    @pl.when(k == pl.num_programs(2) - 1)
    def _finalize():
        o_ref[...] = jnp.maximum(acc_ref[...] + b_ref[...], 0.0).astype(o_ref.dtype)


def fullconnect_forward(x, weight, bias):
    """x: (..., K); weight: (N, K); bias: (N,).  Returns ReLU(x @ W.T + b)."""
    orig_shape = x.shape
    K = orig_shape[-1]
    N, Kw = weight.shape
    assert Kw == K, "weight must be (out_features, in_features)"

    x2d = x.reshape(-1, K)
    M = x2d.shape[0]

    if weight.dtype != x2d.dtype:
        weight = weight.astype(x2d.dtype)
    out_dtype = x2d.dtype

    # ---------------- adaptive tile planning ----------------
    TM = M if M <= TM_MAX else TM_MAX
    TN = N if N <= TN_MAX else TN_MAX
    Kp, TK = _plan_k(K)

    if Kp != K:
        # TODO(synk): pre-pad weights once outside the hot path when K is not
        # 128-aligned; here we pad per call only in this rare fallback.
        x2d = jnp.zeros((M, Kp), x2d.dtype).at[:, :K].set(x2d)
        weight = jnp.zeros((N, Kp), weight.dtype).at[:, :K].set(weight)

    b2d = bias.reshape(1, N).astype(jnp.float32)

    gm = pl.cdiv(M, TM)
    gn = pl.cdiv(N, TN)
    gk = Kp // TK
    # N axis first: for small-batch inference the megacore-parallel leading
    # axis still has >= 2 blocks on v7x.  K (reduction) last, "arbitrary".
    grid = (gn, gm, gk)

    out_is_f32 = (out_dtype == jnp.float32)
    kernel = _linear_relu_kernel_f32out if out_is_f32 else _linear_relu_kernel_acc
    scratch = [] if out_is_f32 else [pltpu.VMEM((TM, TN), jnp.float32)]

    in_isz = jnp.dtype(x2d.dtype).itemsize
    out_isz = jnp.dtype(out_dtype).itemsize
    # Double-buffered x/W/bias tiles + out tile (+ optional acc), plus headroom.
    footprint = (2 * (TM * TK + TN * TK) * in_isz
                 + 2 * TM * TN * out_isz
                 + 2 * TN * 4
                 + (0 if out_is_f32 else TM * TN * 4))
    vmem_limit = int(min(max(2 * footprint, 16 * 1024 * 1024), 48 * 1024 * 1024))

    cost = pl.CostEstimate(
        flops=2 * M * N * Kp,
        transcendentals=0,
        bytes_accessed=(M * Kp + N * Kp) * in_isz + M * N * out_isz + N * 4,
    )

    out = pl.pallas_call(
        kernel,
        out_shape=jax.ShapeDtypeStruct((M, N), out_dtype),
        grid_spec=pltpu.PrefetchScalarGridSpec(
            num_scalar_prefetch=0,
            grid=grid,
            in_specs=[
                pl.BlockSpec((TM, TK), lambda j, i, k: (i, k)),   # x  (M, K)
                pl.BlockSpec((TN, TK), lambda j, i, k: (j, k)),   # W  (N, K) - no transpose
                pl.BlockSpec((1, TN), lambda j, i, k: (0, j)),    # bias (1, N)
            ],
            out_specs=pl.BlockSpec((TM, TN), lambda j, i, k: (i, j)),
            scratch_shapes=scratch,
        ),
        compiler_params=pltpu.CompilerParams(
            dimension_semantics=("parallel", "parallel", "arbitrary"),
            vmem_limit_bytes=vmem_limit,
        ),
        cost_estimate=cost,
    )(x2d, weight, b2d)

    return out.reshape(orig_shape[:-1] + (N,))


# ----------------------- pure-JAX reference (for checking) --------------------
def reference_forward(x, weight, bias, precision=None):
    return jnp.maximum(
        jnp.einsum("...k,nk->...n", x, weight, precision=precision) + bias, 0.0)


if __name__ == "__main__":
    key = jax.random.PRNGKey(0)
    kw, kb, kx = jax.random.split(key, 3)

    # Small shapes consistent with the module (batch=2, in=32, out=16).
    IN_FEATURES, OUT_FEATURES, BATCH = 32, 16, 2
    weight = jax.random.normal(kw, (OUT_FEATURES, IN_FEATURES), jnp.float32) * 0.1
    bias = jax.random.normal(kb, (OUT_FEATURES,), jnp.float32) * 0.1
    x = jax.random.normal(kx, (BATCH, IN_FEATURES), jnp.float32)

    out = jax.block_until_ready(fullconnect_forward(x, weight, bias))
    ref = jax.block_until_ready(reference_forward(x, weight, bias))
    np.testing.assert_allclose(np.asarray(out), np.asarray(ref), rtol=1e-4, atol=1e-5)

    # Second check exercising the tiled path: multi-block M/N, K-reduction
    # loop, and partial edge blocks (cdiv grid with output clipping).
    k2w, k2b, k2x = jax.random.split(jax.random.PRNGKey(1), 3)
    M2, K2, N2 = 300, 1024, 640
    w2 = jax.random.normal(k2w, (N2, K2), jnp.float32) * 0.05
    b2 = jax.random.normal(k2b, (N2,), jnp.float32) * 0.05
    x2 = jax.random.normal(k2x, (M2, K2), jnp.float32)

    out2 = jax.block_until_ready(fullconnect_forward(x2, w2, b2))
    ref2 = jax.block_until_ready(
        reference_forward(x2, w2, b2, precision=lax.Precision.HIGHEST))
    np.testing.assert_allclose(np.asarray(out2), np.asarray(ref2), rtol=5e-3, atol=5e-3)

    print("KERNEL_OK")
</pallas_src>

<mosaic_0001>
module attributes {stable_mosaic.version = 11 : i64} {
  func.func @_linear_relu_kernel_f32out(%arg0: i32, %arg1: i32, %arg2: i32, %arg3: memref<2x32xf32, #tpu.memory_space<vmem>>, %arg4: memref<16x32xf32, #tpu.memory_space<vmem>>, %arg5: memref<1x16xf32, #tpu.memory_space<vmem>>, %arg6: memref<2x16xf32, #tpu.memory_space<vmem>>) attributes {dimension_semantics = [#tpu.dimension_semantics<parallel>, #tpu.dimension_semantics<parallel>, #tpu.dimension_semantics<arbitrary>], iteration_bounds = array<i64: 1, 1, 1>, scalar_prefetch = 0 : i64, scratch_operands = 0 : i64, tpu.core_type = #tpu.core_type<tc>, window_params = [{transform_indices = @transform_0, window_bounds = array<i64: 2, 32>}, {transform_indices = @transform_1, window_bounds = array<i64: 16, 32>}, {transform_indices = @transform_2, window_bounds = array<i64: 1, 16>}, {transform_indices = @transform_3, window_bounds = array<i64: 2, 16>}]} {
    %c0_i32 = arith.constant 0 : i32
    %0 = arith.cmpi eq, %arg2, %c0_i32 : i32
    %1 = arith.extui %0 : i1 to i32
    %c0_i32_0 = arith.constant 0 : i32
    %2 = arith.cmpi ne, %1, %c0_i32_0 : i32
    scf.if %2 {
      %cst_10 = arith.constant 0.000000e+00 : f32
      %12 = vector.broadcast %cst_10 : f32 to vector<2x16xf32>
      %c0_11 = arith.constant 0 : index
      %c0_12 = arith.constant 0 : index
      %13 = vector.load %arg6[%c0_11, %c0_12] : memref<2x16xf32, #tpu.memory_space<vmem>>, vector<2x16xf32>
      tpu.vector_store %arg6[%c0_11, %c0_12], %12 {strides = array<i32>} : memref<2x16xf32, #tpu.memory_space<vmem>>, vector<2x16xf32>,
    } else {
    }
    %c0 = arith.constant 0 : index
    %c0_1 = arith.constant 0 : index
    %3 = vector.load %arg6[%c0, %c0_1] : memref<2x16xf32, #tpu.memory_space<vmem>>, vector<2x16xf32>
    %c0_2 = arith.constant 0 : index
    %c0_3 = arith.constant 0 : index
    %4 = vector.load %arg3[%c0_2, %c0_3] : memref<2x32xf32, #tpu.memory_space<vmem>>, vector<2x32xf32>
    %c0_4 = arith.constant 0 : index
    %c0_5 = arith.constant 0 : index
    %5 = vector.load %arg4[%c0_4, %c0_5] : memref<16x32xf32, #tpu.memory_space<vmem>>, vector<16x32xf32>
    %cst = arith.constant dense<0.000000e+00> : vector<2x16xf32>
    %6 = tpu.matmul %4, %5, %cst {dimension_numbers = #tpu.dot_dimension_numbers<[1], [1], [0], [0], [0, 0, 1, 0], [], []>} : vector<2x32xf32>, vector<16x32xf32>, vector<2x16xf32> -> vector<2x16xf32>
    %7 = arith.addf %3, %6 : vector<2x16xf32>
    %c0_6 = arith.constant 0 : index
    %c0_7 = arith.constant 0 : index
    %8 = vector.load %arg6[%c0_6, %c0_7] : memref<2x16xf32, #tpu.memory_space<vmem>>, vector<2x16xf32>
    tpu.vector_store %arg6[%c0_6, %c0_7], %7 {strides = array<i32>} : memref<2x16xf32, #tpu.memory_space<vmem>>, vector<2x16xf32>,
    %c0_i32_8 = arith.constant 0 : i32
    %9 = arith.cmpi eq, %arg2, %c0_i32_8 : i32
    %10 = arith.extui %9 : i1 to i32
    %c0_i32_9 = arith.constant 0 : i32
    %11 = arith.cmpi ne, %10, %c0_i32_9 : i32
    scf.if %11 {
      %c0_10 = arith.constant 0 : index
      %c0_11 = arith.constant 0 : index
      %12 = vector.load %arg6[%c0_10, %c0_11] : memref<2x16xf32, #tpu.memory_space<vmem>>, vector<2x16xf32>
      %c0_12 = arith.constant 0 : index
      %c0_13 = arith.constant 0 : index
      %13 = vector.load %arg5[%c0_12, %c0_13] : memref<1x16xf32, #tpu.memory_space<vmem>>, vector<1x16xf32>
      %14 = vector.broadcast %13 : vector<1x16xf32> to vector<2x16xf32>
      %15 = arith.addf %12, %14 : vector<2x16xf32>
      %cst_14 = arith.constant 0.000000e+00 : f32
      %16 = vector.broadcast %cst_14 : f32 to vector<2x16xf32>
      %17 = arith.maximumf %15, %16 : vector<2x16xf32>
      %c0_15 = arith.constant 0 : index
      %c0_16 = arith.constant 0 : index
      %18 = vector.load %arg6[%c0_15, %c0_16] : memref<2x16xf32, #tpu.memory_space<vmem>>, vector<2x16xf32>
      tpu.vector_store %arg6[%c0_15, %c0_16], %17 {strides = array<i32>} : memref<2x16xf32, #tpu.memory_space<vmem>>, vector<2x16xf32>,
    } else {
    }
    return
  }
  func.func @transform_0(%arg0: i32, %arg1: i32, %arg2: i32) -> (i32, i32) {
    %c0_i32 = arith.constant 0 : i32
    return %arg1, %arg2 : i32, i32
  }
  func.func @transform_1(%arg0: i32, %arg1: i32, %arg2: i32) -> (i32, i32) {
    %c0_i32 = arith.constant 0 : i32
    return %arg0, %arg2 : i32, i32
  }
  func.func @transform_2(%arg0: i32, %arg1: i32, %arg2: i32) -> (i32, i32) {
    %c0_i32 = arith.constant 0 : i32
    %c0_i32_0 = arith.constant 0 : i32
    return %c0_i32, %arg0 : i32, i32
  }
  func.func @transform_3(%arg0: i32, %arg1: i32, %arg2: i32) -> (i32, i32) {
    %c0_i32 = arith.constant 0 : i32
    return %arg1, %arg0 : i32, i32
  }
}

</mosaic_0001>

<llo_original>
// kernel: tpu_custom_call.1
$region0: #{tpu_custom_call.1}
  #allocation0 [shape = 'u32[]', space=smem, size = 0x4, offset = 0x4, fixed_abs, tag = 'smem constant byte address 0x4 - core index']
  #allocation1 [shape = 'u32[144,128]{1,0:T(1,128)}', space=vmem, size = 0x12000, scoped, tag = 'internal scratch']
  %s0 = inlined_call_operand.hbm [shape: f32[2,32], index: 0, kind: input, shape index: {}]
  %s1 = inlined_call_operand.hbm [shape: f32[16,32], index: 1, kind: input, shape index: {}]
  %s2 = inlined_call_operand.vmem [shape: f32[1,16], index: 2, kind: input, shape index: {}]
  %s3 = inlined_call_operand.hbm [shape: f32[2,16], index: 3, kind: output, shape index: {}]
  %s4 = sld [smem:[#allocation0]]
  $region38: #{tpu_custom_call.1} parent=0
    _
  %s6 = ssub.s32 1, %s4
  %s7 = scalar_select 0, %s6, %s4
  $region1: #{tpu_custom_call.1} parent=0
    #allocation2 [shape = 'u8[1024]{0}', space=vmem, size = 0x400, scoped, tag = 'input window, operand 0, single buffered']
    #allocation3 [shape = 's32[1]{0}', space=sflag, size = 0x4, scoped, tag = 'scoped memory for tpu_custom_call.1']
    #allocation4 [shape = 's32[1]{0}', space=sflag, size = 0x4, scoped, tag = 'scoped memory for tpu_custom_call.1']
    #allocation5 [shape = 'u8[8192]{0}', space=vmem, size = 0x2000, scoped, tag = 'input window, operand 1, single buffered']
    #allocation6 [shape = 's32[1]{0}', space=sflag, size = 0x4, scoped, tag = 'scoped memory for tpu_custom_call.1']
    #allocation7 [shape = 'u8[1024]{0}', space=vmem, size = 0x400, scoped, tag = 'output window, operand 0, single buffered']
    %8 = vsyncpa [#allocation3], 0
    %9 = vsyncpa [#allocation6], 0
    %10 = vsyncpa [#allocation4], 0
    // Predicated region
    $region2: #{tpu_custom_call.1} parent=1 // pred_check
      _
    $region3: #{tpu_custom_call.1} parent=1 // pred_check_branch
      %12 = sbr.rel (0) target = $region5
    $region4: #{tpu_custom_call.1} parent=1 // pred_region
      %s14 = ssub.s32 32, 32
      %15 = vsyncadd [#allocation3], %s14
      %s17 = sshll.u32 [#allocation2], 4
      %s18 = int_to_ptr.vmem [resolvable:$true] %s17
      %20 = dma.hbm_to_vmem [thread:$0]  %s0, 32, %s18, [#allocation3]
    $region5: #{tpu_custom_call.1} parent=1 // pred_fallthru
      _
    // Predicated region
    $region6: #{tpu_custom_call.1} parent=1 // pred_check
      _
    $region7: #{tpu_custom_call.1} parent=1 // pred_check_branch
      %22 = sbr.rel (0) target = $region9
    $region8: #{tpu_custom_call.1} parent=1 // pred_region
      %s24 = ssub.s32 256, 256
      %25 = vsyncadd [#allocation6], %s24
      %s26 = sshll.u32 [#allocation5], 4
      %s27 = int_to_ptr.vmem [resolvable:$true] %s26
      %32 = dma.hbm_to_vmem [thread:$0]  %s1, 256, %s27, [#allocation6], 128, 128, 8
    $region9: #{tpu_custom_call.1} parent=1 // pred_fallthru
      _
    // Predicated region
    $region10: #{tpu_custom_call.1} parent=1 // pred_check
      _
    $region11: #{tpu_custom_call.1} parent=1 // pred_check_branch
      %34 = sbr.rel (0) target = $region13
    $region12: #{tpu_custom_call.1} parent=1 // pred_region
      _
    $region13: #{tpu_custom_call.1} parent=1 // pred_fallthru
      _
    // Predicated region
    $region14: #{tpu_custom_call.1} parent=1 // pred_check
      _
    $region15: #{tpu_custom_call.1} parent=1 // pred_check_branch
      %36 = sbr.rel (0) target = $region17
    $region16: #{tpu_custom_call.1} parent=1 // pred_region
      %37 = dma.done [#allocation3], 32
    $region17: #{tpu_custom_call.1} parent=1 // pred_fallthru
      _
    // Predicated region
    $region18: #{tpu_custom_call.1} parent=1 // pred_check
      _
    $region19: #{tpu_custom_call.1} parent=1 // pred_check_branch
      %39 = sbr.rel (0) target = $region21
    $region20: #{tpu_custom_call.1} parent=1 // pred_region
      %40 = dma.done [#allocation6], 256
    $region21: #{tpu_custom_call.1} parent=1 // pred_fallthru
      _
    %p41 = scmp.eq.s32.totalorder 0, 0
    // Predicated region
    $region22: #{tpu_custom_call.1} parent=1 // pred_check
      %p42 = pneg %p41
    $region23: #{tpu_custom_call.1} parent=1 // pred_check_branch
      %44 = sbr.rel (%p42) target = $region25
    $region24: #{tpu_custom_call.1} parent=1 // pred_region
      %vm45 = vcmask 123904
      %46 = vst.msk [vmem:[#allocation7] sm:$0x3] %vm45, 0.0
    $region25: #{tpu_custom_call.1} parent=1 // pred_fallthru
      _
    %v47 = vld [vmem:[#allocation7] sm:$0x3]
    %v48 = vld [vmem:[#allocation2] sm:$0x3]
    %v49 = vld [vmem:[#allocation5] sm:$0xff]
    %v50 = vld [vmem:[#allocation5 + $0x8] sm:$0xff]
    %vm51 = vcmask 261120
    %v53 = vsel %vm51, %v48, 0
    %v56 = vsel %vm51, %v49, 0
    %v59 = vsel %vm51, %v50, 0
    %61 = vmatprep.subr.mxu0 0.0
    %62 = vmatpush1.xpose.msra.mxu0 0.0
    %63 = vmatprep.subr.mxu0 0.0
    %64 = vmatpush1.xpose.msra.mxu0 0.0
    %65 = vmatprep.subr.mxu0 0.0
    %66 = vmatpush1.xpose.msra.mxu0 0.0
    %67 = vmatprep.subr.mxu0 0.0
    %68 = vmatpush1.xpose.msra.mxu0 0.0
    %69 = vmatprep.subr.mxu0 0.0
    %70 = vmatpush1.xpose.msra.mxu0 0.0
    %71 = vmatprep.subr.mxu0 0.0
    %72 = vmatpush1.xpose.msra.mxu0 0.0
    %73 = vmatprep.subr.mxu0 0.0
    %74 = vmatpush1.xpose.msra.mxu0 0.0
    %75 = vmatprep.subr.mxu0 0.0
    %76 = vmatpush1.xpose.msra.mxu0 0.0
    %77 = vmatprep.subr.mxu0 0.0
    %78 = vmatpush1.xpose.msra.mxu0 0.0
    %79 = vmatprep.subr.mxu0 0.0
    %80 = vmatpush1.xpose.msra.mxu0 0.0
    %81 = vmatprep.subr.mxu0 0.0
    %82 = vmatpush1.xpose.msra.mxu0 0.0
    %83 = vmatprep.subr.mxu0 0.0
    %84 = vmatpush1.xpose.msra.mxu0 0.0
    %85 = vmatprep.subr.mxu0 0.0
    %86 = vmatpush1.xpose.msra.mxu0 0.0
    %87 = vmatprep.subr.mxu0 0.0
    %88 = vmatpush1.xpose.msra.mxu0 0.0
    %89 = vmatprep.subr.mxu0 0.0
    %90 = vmatpush1.xpose.msra.mxu0 %v59
    %91 = vmatprep.subr.mxu0 0.0
    %92 = vmatpush1.xpose.msra.mxu0 %v56
    %93 = vmatprep.subr.mxu0 0.0
    %94 = vmatpush2.xpose.msra.mxu0 0.0
    %95 = vmatprep.subr.mxu0 0.0
    %96 = vmatpush2.xpose.msra.mxu0 0.0
    %97 = vmatprep.subr.mxu0 0.0
    %98 = vmatpush2.xpose.msra.mxu0 0.0
    %99 = vmatprep.subr.mxu0 0.0
    %100 = vmatpush2.xpose.msra.mxu0 0.0
    %101 = vmatprep.subr.mxu0 0.0
    %102 = vmatpush2.xpose.msra.mxu0 0.0
    %103 = vmatprep.subr.mxu0 0.0
    %104 = vmatpush2.xpose.msra.mxu0 0.0
    %105 = vmatprep.subr.mxu0 0.0
    %106 = vmatpush2.xpose.msra.mxu0 0.0
    %107 = vmatprep.subr.mxu0 0.0
    %108 = vmatpush2.xpose.msra.mxu0 0.0
    %109 = vmatprep.subr.mxu0 0.0
    %110 = vmatpush2.xpose.msra.mxu0 0.0
    %111 = vmatprep.subr.mxu0 0.0
    %112 = vmatpush2.xpose.msra.mxu0 0.0
    %113 = vmatprep.subr.mxu0 0.0
    %114 = vmatpush2.xpose.msra.mxu0 0.0
    %115 = vmatprep.subr.mxu0 0.0
    %116 = vmatpush2.xpose.msra.mxu0 0.0
    %117 = vmatprep.subr.mxu0 0.0
    %118 = vmatpush2.xpose.msra.mxu0 0.0
    %119 = vmatprep.subr.mxu0 0.0
    %120 = vmatpush2.xpose.msra.mxu0 0.0
    %121 = vmatprep.subr.mxu0 0.0
    %122 = vmatpush2.xpose.msra.mxu0 0.0
    %123 = vmatprep.subr.mxu0 0.0
    %124 = vmatpush2.xpose.msra.mxu0 0.0
    %125 = vmatprep.mubr.f32.mxu0 0.0
    %126 = vmatmul.mubr.f32.gmra.mxu0 %v53
    %v127 = vpop.f32.mrf.mxu0
    %v128 = vadd.f32 0.0, %v127
    %v129 = vpop.f32.mrf.mxu0
    %130 = vdwg.mxu0
    %v131 = vadd.f32 %v47, %v128
    %vm132 = vcmask 123904
    %133 = vst.msk [vmem:[#allocation7] sm:$0x3] %vm132, %v131
    // Predicated region
    $region26: #{tpu_custom_call.1} parent=1 // pred_check
      %p134 = pneg %p41
    $region27: #{tpu_custom_call.1} parent=1 // pred_check_branch
      %136 = sbr.rel (%p134) target = $region29
    $region28: #{tpu_custom_call.1} parent=1 // pred_region
      %v137 = vld [vmem:[#allocation7] sm:$0x3]
      %v138 = vld [vmem:[%s2] sm:$0x1]
      %v140 = vlaneseq
      %v141 = vshrl.u32 %v140, 7
      %v142 = vsub.s32 0, %v141
      %v143 = vrot.slane %v138, %v142
      %v145 = vadd.f32 %v137, %v143
      %v146 = vmax.f32 %v145, 0.0
      %147 = vst.msk [vmem:[#allocation7] sm:$0x3] %vm132, %v146
    $region29: #{tpu_custom_call.1} parent=1 // pred_fallthru
      _
    // Predicated region
    $region30: #{tpu_custom_call.1} parent=1 // pred_check
      _
    $region31: #{tpu_custom_call.1} parent=1 // pred_check_branch
      %149 = sbr.rel (0) target = $region33
    $region32: #{tpu_custom_call.1} parent=1 // pred_region
      %s151 = ssub.s32 32, 32
      %152 = vsyncadd [#allocation4], %s151
      %s154 = sshll.u32 [#allocation7], 4
      %s155 = int_to_ptr.vmem [resolvable:$true] %s154
      %157 = dma.vmem_to_hbm [thread:$0]  %s155, 32, %s3, [#allocation4]
    $region33: #{tpu_custom_call.1} parent=1 // pred_fallthru
      _
    // Predicated region
    $region34: #{tpu_custom_call.1} parent=1 // pred_check
      _
    $region35: #{tpu_custom_call.1} parent=1 // pred_check_branch
      %159 = sbr.rel (0) target = $region37
    $region36: #{tpu_custom_call.1} parent=1 // pred_region
      %160 = dma.done [#allocation4], 32
    $region37: #{tpu_custom_call.1} parent=1 // pred_fallthru
      _
    %161 = vsyncpa [#allocation3], 1
    %162 = vsyncpa [#allocation6], 1
    %163 = vsyncpa [#allocation4], 1

</llo_original>
